<compile_context>
chip_gen: v6e
topology: v6e:2x2x1
jax: 0.10.0
libtpu: 0.0.40
codegen_flags: <defaults>
</compile_context>

<pallas_src>
import jax
import jax.numpy as jnp
from jax.experimental import pallas as pl
from jax.experimental.pallas import tpu as pltpu


def _nconv2_kernel(x_ref, a_ref, o_ref):
    # x_ref: (V, Lt), a_ref: (W, V), o_ref: (W, Lt)
    o_ref[...] = jnp.dot(
        a_ref[...], x_ref[...], preferred_element_type=jnp.float32
    ).astype(o_ref.dtype)


def _pick_lane_tile(M, max_tile=2048):
    """Largest multiple of 128 that divides M and is <= max_tile.

    If M is not a multiple of 128, use the full dimension (full-extent block
    dims are exempt from the (8,128) divisibility rule)."""
    if M % 128 != 0:
        return M
    Lt = min(M, (max_tile // 128) * 128)
    while M % Lt != 0:
        Lt -= 128
    return Lt


def nconv2(x, A, *, max_lane_tile=2048):
    """x: (N, C, V, L), A: (N, W, V) -> (N, C, W, L).

    Equivalent to einsum('ncvl,nwv->ncwl', x, A)."""
    N, C, V, L = x.shape
    N2, W, V2 = A.shape
    assert N == N2 and V == V2, "shape mismatch between x and A"

    M = C * L
    # Fuse C into the lane dim: (N, C, V, L) -> (N, V, C, L) -> (N, V, C*L)
    x_fused = jnp.transpose(x, (0, 2, 1, 3)).reshape(N, V, M)

    Lt = _pick_lane_tile(M, max_lane_tile)
    num_m = M // Lt

    # TODO(synk): for very large V, add a K-blocking grid axis ("arbitrary")
    # with an f32 VMEM accumulator instead of loading the full (V, Lt) slab.
    out = pl.pallas_call(
        _nconv2_kernel,
        out_shape=jax.ShapeDtypeStruct((N, W, M), x.dtype),
        grid=(N, num_m),
        in_specs=[
            pl.BlockSpec((None, V, Lt), lambda n, m: (n, 0, m)),
            pl.BlockSpec((None, W, V), lambda n, m: (n, 0, 0)),
        ],
        out_specs=pl.BlockSpec((None, W, Lt), lambda n, m: (n, 0, m)),
        compiler_params=pltpu.CompilerParams(
            dimension_semantics=("parallel", "parallel"),
        ),
    )(x_fused, A)

    # (N, W, C*L) -> (N, W, C, L) -> (N, C, W, L)
    return out.reshape(N, W, C, L).transpose(0, 2, 1, 3)


if __name__ == "__main__":
    # Small deterministic inputs consistent with the einsum:
    #   x: (N, C, V, L) = (2, 4, 16, 32),  A: (N, W, V) = (2, 16, 16)
    key = jax.random.PRNGKey(0)
    kx, ka = jax.random.split(key)
    N, C, V, L, W = 2, 4, 16, 32, 16
    x = jax.random.normal(kx, (N, C, V, L), dtype=jnp.float32)
    A = jax.random.normal(ka, (N, W, V), dtype=jnp.float32)

    out = nconv2(x, A)
    out = jax.block_until_ready(out)

    # Correctness check against plain-JAX einsum reference.
    ref = jnp.einsum("ncvl,nwv->ncwl", x, A)
    assert out.shape == (N, C, W, L)
    assert jnp.allclose(out, ref, atol=1e-5, rtol=1e-5), "mismatch vs reference"

    print("KERNEL_OK")
</pallas_src>

<mosaic_0001>
module attributes {stable_mosaic.version = 11 : i64} {
  func.func @_nconv2_kernel(%arg0: i32, %arg1: i32, %arg2: memref<1x16x128xf32, #tpu.memory_space<vmem>>, %arg3: memref<1x16x16xf32, #tpu.memory_space<vmem>>, %arg4: memref<1x16x128xf32, #tpu.memory_space<vmem>>) attributes {dimension_semantics = [#tpu.dimension_semantics<parallel>, #tpu.dimension_semantics<parallel>], iteration_bounds = array<i64: 2, 1>, scalar_prefetch = 0 : i64, scratch_operands = 0 : i64, tpu.core_type = #tpu.core_type<tc>, window_params = [{transform_indices = @transform_0, window_bounds = array<i64: 1, 16, 128>}, {transform_indices = @transform_1, window_bounds = array<i64: 1, 16, 16>}, {transform_indices = @transform_2, window_bounds = array<i64: 1, 16, 128>}]} {
    %c0 = arith.constant 0 : index
    %c0_0 = arith.constant 0 : index
    %c0_1 = arith.constant 0 : index
    %0 = vector.load %arg3[%c0, %c0_0, %c0_1] : memref<1x16x16xf32, #tpu.memory_space<vmem>>, vector<1x16x16xf32>
    %1 = vector.shape_cast %0 : vector<1x16x16xf32> to vector<16x16xf32>
    %c0_2 = arith.constant 0 : index
    %c0_3 = arith.constant 0 : index
    %c0_4 = arith.constant 0 : index
    %2 = vector.load %arg2[%c0_2, %c0_3, %c0_4] : memref<1x16x128xf32, #tpu.memory_space<vmem>>, vector<1x16x128xf32>
    %3 = vector.shape_cast %2 : vector<1x16x128xf32> to vector<16x128xf32>
    %cst = arith.constant dense<0.000000e+00> : vector<16x128xf32>
    %4 = tpu.matmul %1, %3, %cst {dimension_numbers = #tpu.dot_dimension_numbers<[1], [0], [0], [1], [0, 0, 1, 1], [], []>} : vector<16x16xf32>, vector<16x128xf32>, vector<16x128xf32> -> vector<16x128xf32>
    %c0_5 = arith.constant 0 : index
    %c0_6 = arith.constant 0 : index
    %c0_7 = arith.constant 0 : index
    %5 = vector.load %arg4[%c0_5, %c0_6, %c0_7] : memref<1x16x128xf32, #tpu.memory_space<vmem>>, vector<1x16x128xf32>
    %6 = vector.shape_cast %5 : vector<1x16x128xf32> to vector<16x128xf32>
    %7 = vector.shape_cast %4 : vector<16x128xf32> to vector<1x16x128xf32>
    tpu.vector_store %arg4[%c0_5, %c0_6, %c0_7], %7 {strides = array<i32>} : memref<1x16x128xf32, #tpu.memory_space<vmem>>, vector<1x16x128xf32>,
    return
  }
  func.func @transform_0(%arg0: i32, %arg1: i32) -> (i32, i32, i32) {
    %c0_i32 = arith.constant 0 : i32
    %c0_i32_0 = arith.constant 0 : i32
    return %arg0, %c0_i32, %arg1 : i32, i32, i32
  }
  func.func @transform_1(%arg0: i32, %arg1: i32) -> (i32, i32, i32) {
    %c0_i32 = arith.constant 0 : i32
    %c0_i32_0 = arith.constant 0 : i32
    %c0_i32_1 = arith.constant 0 : i32
    return %arg0, %c0_i32, %c0_i32_0 : i32, i32, i32
  }
  func.func @transform_2(%arg0: i32, %arg1: i32) -> (i32, i32, i32) {
    %c0_i32 = arith.constant 0 : i32
    %c0_i32_0 = arith.constant 0 : i32
    return %arg0, %c0_i32, %arg1 : i32, i32, i32
  }
}

</mosaic_0001>

<llo_original>
// kernel: tpu_custom_call.1
$region0: #{tpu_custom_call.1}
  #allocation0 [shape = 'u32[]', space=smem, size = 0x4, offset = 0x4, fixed_abs, tag = 'smem constant byte address 0x4 - core index']
  #allocation1 [shape = 'u32[144,128]{1,0:T(1,128)}', space=vmem, size = 0x12000, scoped, tag = 'internal scratch']
  %s0 = inlined_call_operand.hbm [shape: f32[2,16,128], index: 0, kind: input, shape index: {}]
  %s1 = inlined_call_operand.hbm [shape: f32[2,16,16], index: 1, kind: input, shape index: {}]
  %s2 = inlined_call_operand.hbm [shape: f32[2,16,128], index: 2, kind: output, shape index: {}]
  %s3 = sld [smem:[#allocation0]]
  $region49: #{tpu_custom_call.1} parent=0
    _
  %s5 = ssub.s32 1, %s3
  %s6 = scalar_select 0, %s5, %s3
  $region1: #{tpu_custom_call.1} parent=0
    #allocation2 [shape = 'u8[16384]{0}', space=vmem, size = 0x4000, scoped, tag = 'input window, operand 0']
    #allocation3 [shape = 's32[2]{0}', space=sflag, size = 0x8, scoped, tag = 'scoped memory for tpu_custom_call.1']
    #allocation4 [shape = 's32[2]{0}', space=sflag, size = 0x8, scoped, tag = 'scoped memory for tpu_custom_call.1']
    #allocation5 [shape = 'u8[16384]{0}', space=vmem, size = 0x4000, scoped, tag = 'input window, operand 1']
    #allocation6 [shape = 's32[2]{0}', space=sflag, size = 0x8, scoped, tag = 'scoped memory for tpu_custom_call.1']
    #allocation7 [shape = 'u8[16384]{0}', space=vmem, size = 0x4000, scoped, tag = 'output window, operand 0']
    %7 = vsyncpa [#allocation3], 0
    %s8 = scalar_lea.sflag [#allocation3], 1
    %9 = vsyncpa %s8, 0
    %10 = vsyncpa [#allocation6], 0
    %s11 = scalar_lea.sflag [#allocation6], 1
    %12 = vsyncpa %s11, 0
    %13 = vsyncpa [#allocation4], 0
    %s14 = scalar_lea.sflag [#allocation4], 1
    %15 = vsyncpa %s14, 0
    loop: start=0, step=1, limit=4
    $region2: #{tpu_custom_call.1} parent=1 // loop_pre_header
      _
    $region3: #{tpu_custom_call.1} parent=1 // loop_header
      %s17 = sphi 0, %s21
      %p18 = scmp.ge.s32.totalorder %s17, 4
      %s24 = sphi 0, %s36
      %s25 = sphi 0, %s32
      %s26 = sphi 0, %s24
      %s27 = sphi 0, %s25
      %s28 = sphi 0, %s26
      %s29 = sphi 0, %s27
      %s41 = sphi 0, %s43
      %s44 = sphi 0, %s41
      %s45 = sphi 0, %s44
      %s61 = sphi 0, %s45
      %s67 = sphi 0, %s69
      %s70 = sphi 0, %s67
      %s71 = sphi 0, %s70
      %s87 = sphi 0, %s71
      %s95 = sphi 0, %s97
      %s98 = sphi 0, %s95
      %s99 = sphi 0, %s98
      %s115 = sphi 0, %s99
    $region4: #{tpu_custom_call.1} parent=1 // loop_header_branch
      %20 = sbr.rel (%p18) target = $region8
    $region5: #{tpu_custom_call.1} parent=1 // loop_body
      %s22 = ssub.s32 %s17, 1
      %s23 = ssub.s32 %s17, 2
      %s30 = sadd.s32 1, %s25
      %p31 = scmp.ge.s32.totalorder %s30, 1
      %s32 = scalar_select %p31, 0, %s30
      %s33 = sadd.s32 1, %s24
      %s34 = scalar_select %p31, %s33, %s24
      %p35 = scmp.ge.s32.totalorder %s34, 2
      %s36 = scalar_select %p35, 0, %s34
      %s37 = ssub.s32 %s24, %s36
      %s38 = ssub.s32 %s25, %s32
      %s39 = sor.u32 %s37, %s38
      %p40 = scmp.eq.s32.totalorder %s39, 0
      %s42 = sadd.s32 %s41, 1
      %s43 = scalar_select %p40, %s41, %s42
      %p46 = pneg %p40
      %p47 = scmp.eq.s32.totalorder %s17, 1
      %p48 = por %p46, %p47
      %p49 = scmp.ne.s32.totalorder %s41, %s44
      %p50 = scmp.eq.s32.totalorder %s17, 0
      %p51 = por %p49, %p50
      %p52 = scmp.ne.s32.totalorder %s41, %s44
      %p53 = scmp.eq.s32.totalorder %s22, 1
      %p54 = por %p52, %p53
      %p55 = scmp.ne.s32.totalorder %s44, %s45
      %p56 = scmp.eq.s32.totalorder %s22, 0
      %p57 = por %p55, %p56
      %p58 = scmp.ne.s32.totalorder %s44, %s45
      %p59 = scmp.eq.s32.totalorder %s23, 1
      %p60 = por %p58, %p59
      %p62 = scmp.ne.s32.totalorder %s45, %s61
      %p63 = scmp.eq.s32.totalorder %s23, 0
      %p64 = por %p62, %p63
      %s65 = ssub.s32 %s24, %s36
      %p66 = scmp.eq.s32.totalorder %s65, 0
      %s68 = sadd.s32 %s67, 1
      %s69 = scalar_select %p66, %s67, %s68
      %p72 = pneg %p66
      %p73 = scmp.eq.s32.totalorder %s17, 1
      %p74 = por %p72, %p73
      %p75 = scmp.ne.s32.totalorder %s67, %s70
      %p76 = scmp.eq.s32.totalorder %s17, 0
      %p77 = por %p75, %p76
      %p78 = scmp.ne.s32.totalorder %s67, %s70
      %p79 = scmp.eq.s32.totalorder %s22, 1
      %p80 = por %p78, %p79
      %p81 = scmp.ne.s32.totalorder %s70, %s71
      %p82 = scmp.eq.s32.totalorder %s22, 0
      %p83 = por %p81, %p82
      %p84 = scmp.ne.s32.totalorder %s70, %s71
      %p85 = scmp.eq.s32.totalorder %s23, 1
      %p86 = por %p84, %p85
      %p88 = scmp.ne.s32.totalorder %s71, %s87
      %p89 = scmp.eq.s32.totalorder %s23, 0
      %p90 = por %p88, %p89
      %s91 = ssub.s32 %s24, %s36
      %s92 = ssub.s32 %s25, %s32
      %s93 = sor.u32 %s91, %s92
      %p94 = scmp.eq.s32.totalorder %s93, 0
      %s96 = sadd.s32 %s95, 1
      %s97 = scalar_select %p94, %s95, %s96
      %p100 = pneg %p94
      %p101 = scmp.eq.s32.totalorder %s17, 1
      %p102 = por %p100, %p101
      %p103 = scmp.ne.s32.totalorder %s95, %s98
      %p104 = scmp.eq.s32.totalorder %s17, 0
      %p105 = por %p103, %p104
      %p106 = scmp.ne.s32.totalorder %s95, %s98
      %p107 = scmp.eq.s32.totalorder %s22, 1
      %p108 = por %p106, %p107
      %p109 = scmp.ne.s32.totalorder %s98, %s99
      %p110 = scmp.eq.s32.totalorder %s22, 0
      %p111 = por %p109, %p110
      %p112 = scmp.ne.s32.totalorder %s98, %s99
      %p113 = scmp.eq.s32.totalorder %s23, 1
      %p114 = por %p112, %p113
      %p116 = scmp.ne.s32.totalorder %s99, %s115
      %p117 = scmp.eq.s32.totalorder %s23, 0
      %p118 = por %p116, %p117
      %p119 = scmp.le.s32.totalorder 1, %s17
      %p120 = scmp.lt.s32.totalorder %s17, 3
      %p121 = pnand %p119, %p120
      %p122 = pneg %p121
      // Predicated region
      $region9: #{tpu_custom_call.1} parent=5 // pred_check
        _
      $region10: #{tpu_custom_call.1} parent=5 // pred_check_branch
        %124 = sbr.rel (%p121) target = $region12
      $region11: #{tpu_custom_call.1} parent=5 // pred_region
        %s125 = ssub.s32 %s17, 1
      $region12: #{tpu_custom_call.1} parent=5 // pred_fallthru
        _
      %p126 = scmp.lt.s32.totalorder %s17, 2
      // Predicated region
      $region13: #{tpu_custom_call.1} parent=5 // pred_check
        %p127 = pneg %p126
      $region14: #{tpu_custom_call.1} parent=5 // pred_check_branch
        %129 = sbr.rel (%p127) target = $region16
      $region15: #{tpu_custom_call.1} parent=5 // pred_region
        // Predicated region
        $region17: #{tpu_custom_call.1} parent=15 // pred_check
          %p130 = pneg %p51
        $region18: #{tpu_custom_call.1} parent=15 // pred_check_branch
          %132 = sbr.rel (%p130) target = $region20
        $region19: #{tpu_custom_call.1} parent=15 // pred_region
          %s133 = sand.u32 %s41, 1
          %s134 = scalar_lea.sflag [#allocation3], %s133
          %s135 = sand.u32 %s41, 1
          %s136 = smul.addr %s135, 16
          %s137 = scalar_lea.vmem [#allocation2], %s136
          %s139 = ssub.s32 256, 256
          %140 = vsyncadd %s134, %s139
          %s141 = smul.addr %s24, 2
          %s142 = sadd.s32 %s25, %s141
          %s143 = smul.addr %s142, 128
          %s144 = scalar_lea.hbm %s0, %s143
          %s145 = sshll.u32 %s137, 4
          %s146 = int_to_ptr.vmem [resolvable:$true] %s145
          %151 = dma.hbm_to_vmem [thread:$0]  %s144, 256, %s146, %s134, 128, 128, 8
        $region20: #{tpu_custom_call.1} parent=15 // pred_fallthru
          _
        // Predicated region
        $region21: #{tpu_custom_call.1} parent=15 // pred_check
          %p152 = pneg %p77
        $region22: #{tpu_custom_call.1} parent=15 // pred_check_branch
          %154 = sbr.rel (%p152) target = $region24
        $region23: #{tpu_custom_call.1} parent=15 // pred_region
          %s155 = sand.u32 %s67, 1
          %s156 = scalar_lea.sflag [#allocation6], %s155
          %s157 = sand.u32 %s67, 1
          %s158 = smul.addr %s157, 16
          %s159 = scalar_lea.vmem [#allocation5], %s158
          %s161 = ssub.s32 256, 256
          %162 = vsyncadd %s156, %s161
          %s163 = smul.addr %s24, 2
          %s164 = smul.addr %s163, 128
          %s165 = scalar_lea.hbm %s1, %s164
          %s166 = sshll.u32 %s159, 4
          %s167 = int_to_ptr.vmem [resolvable:$true] %s166
          %172 = dma.hbm_to_vmem [thread:$0]  %s165, 256, %s167, %s156, 128, 128, 8
        $region24: #{tpu_custom_call.1} parent=15 // pred_fallthru
          _
      $region16: #{tpu_custom_call.1} parent=5 // pred_fallthru
        _
      %p173 = scmp.le.s32.totalorder 1, %s17
      %p174 = scmp.lt.s32.totalorder %s17, 3
      %p175 = pnand %p173, %p174
      %p176 = pneg %p175
      // Predicated region
      $region25: #{tpu_custom_call.1} parent=5 // pred_check
        _
      $region26: #{tpu_custom_call.1} parent=5 // pred_check_branch
        %178 = sbr.rel (%p175) target = $region28
      $region27: #{tpu_custom_call.1} parent=5 // pred_region
        %s179 = ssub.s32 %s17, 1
        %s180 = sand.u32 %s44, 1
        %s181 = scalar_lea.sflag [#allocation3], %s180
        %s182 = sand.u32 %s44, 1
        %s183 = smul.addr %s182, 16
        %s184 = scalar_lea.vmem [#allocation2], %s183
        // Predicated region
        $region29: #{tpu_custom_call.1} parent=27 // pred_check
          %p185 = pneg %p57
        $region30: #{tpu_custom_call.1} parent=27 // pred_check_branch
          %187 = sbr.rel (%p185) target = $region32
        $region31: #{tpu_custom_call.1} parent=27 // pred_region
          %188 = dma.done %s181, 256
        $region32: #{tpu_custom_call.1} parent=27 // pred_fallthru
          _
        %s189 = sand.u32 %s70, 1
        %s190 = scalar_lea.sflag [#allocation6], %s189
        %s191 = sand.u32 %s70, 1
        %s192 = smul.addr %s191, 16
        %s193 = scalar_lea.vmem [#allocation5], %s192
        // Predicated region
        $region33: #{tpu_custom_call.1} parent=27 // pred_check
          %p194 = pneg %p83
        $region34: #{tpu_custom_call.1} parent=27 // pred_check_branch
          %196 = sbr.rel (%p194) target = $region36
        $region35: #{tpu_custom_call.1} parent=27 // pred_region
          %197 = dma.done %s190, 256
        $region36: #{tpu_custom_call.1} parent=27 // pred_fallthru
          _
        %s198 = sand.u32 %s44, 1
        %s199 = scalar_lea.sflag [#allocation3], %s198
        %s200 = sand.u32 %s44, 1
        %s201 = smul.addr %s200, 16
        %s202 = scalar_lea.vmem [#allocation2], %s201
        %p203 = pneg %p57
        %p204 = pneg %p54
        %s205 = sand.u32 %s70, 1
        %s206 = scalar_lea.sflag [#allocation6], %s205
        %s207 = sand.u32 %s70, 1
        %s208 = smul.addr %s207, 16
        %s209 = scalar_lea.vmem [#allocation5], %s208
        %p210 = pneg %p83
        %p211 = pneg %p80
        %p212 = pneg %p111
        %p213 = pneg %p108
        %s214 = sand.u32 %s98, 1
        %s215 = scalar_lea.sflag [#allocation4], %s214
        %s216 = sand.u32 %s98, 1
        %s217 = smul.addr %s216, 16
        %s218 = scalar_lea.vmem [#allocation7], %s217
        %v219 = vld [vmem:[%s193] sm:$0xff]
        %v220 = vld [vmem:[%s193 + $0x8] sm:$0xff]
        %v221 = vld [vmem:[%s184] sm:$0xff]
        %v222 = vld [vmem:[%s184 + $0x8] sm:$0xff]
        %vm223 = vcmask 130048
        %v225 = vsel %vm223, %v219, 0
        %v228 = vsel %vm223, %v220, 0
        %230 = vmatprep.subr.mxu0 0.0
        %231 = vmatpush1.msra.mxu0 0.0
        %232 = vmatprep.subr.mxu0 0.0
        %233 = vmatpush1.msra.mxu0 0.0
        %234 = vmatprep.subr.mxu0 0.0
        %235 = vmatpush1.msra.mxu0 0.0
        %236 = vmatprep.subr.mxu0 0.0
        %237 = vmatpush1.msra.mxu0 0.0
        %238 = vmatprep.subr.mxu0 0.0
        %239 = vmatpush1.msra.mxu0 0.0
        %240 = vmatprep.subr.mxu0 0.0
        %241 = vmatpush1.msra.mxu0 0.0
        %242 = vmatprep.subr.mxu0 0.0
        %243 = vmatpush1.msra.mxu0 0.0
        %244 = vmatprep.subr.mxu0 0.0
        %245 = vmatpush1.msra.mxu0 0.0
        %246 = vmatprep.subr.mxu0 0.0
        %247 = vmatpush1.msra.mxu0 0.0
        %248 = vmatprep.subr.mxu0 0.0
        %249 = vmatpush1.msra.mxu0 0.0
        %250 = vmatprep.subr.mxu0 0.0
        %251 = vmatpush1.msra.mxu0 0.0
        %252 = vmatprep.subr.mxu0 0.0
        %253 = vmatpush1.msra.mxu0 0.0
        %254 = vmatprep.subr.mxu0 0.0
        %255 = vmatpush1.msra.mxu0 0.0
        %256 = vmatprep.subr.mxu0 0.0
        %257 = vmatpush1.msra.mxu0 0.0
        %258 = vmatprep.subr.mxu0 0.0
        %259 = vmatpush1.msra.mxu0 %v222
        %260 = vmatprep.subr.mxu0 0.0
        %261 = vmatpush1.msra.mxu0 %v221
        %262 = vmatprep.subr.mxu0 0.0
        %263 = vmatpush2.msra.mxu0 0.0
        %264 = vmatprep.subr.mxu0 0.0
        %265 = vmatpush2.msra.mxu0 0.0
        %266 = vmatprep.subr.mxu0 0.0
        %267 = vmatpush2.msra.mxu0 0.0
        %268 = vmatprep.subr.mxu0 0.0
        %269 = vmatpush2.msra.mxu0 0.0
        %270 = vmatprep.subr.mxu0 0.0
        %271 = vmatpush2.msra.mxu0 0.0
        %272 = vmatprep.subr.mxu0 0.0
        %273 = vmatpush2.msra.mxu0 0.0
        %274 = vmatprep.subr.mxu0 0.0
        %275 = vmatpush2.msra.mxu0 0.0
        %276 = vmatprep.subr.mxu0 0.0
        %277 = vmatpush2.msra.mxu0 0.0
        %278 = vmatprep.subr.mxu0 0.0
        %279 = vmatpush2.msra.mxu0 0.0
        %280 = vmatprep.subr.mxu0 0.0
        %281 = vmatpush2.msra.mxu0 0.0
        %282 = vmatprep.subr.mxu0 0.0
        %283 = vmatpush2.msra.mxu0 0.0
        %284 = vmatprep.subr.mxu0 0.0
        %285 = vmatpush2.msra.mxu0 0.0
        %286 = vmatprep.subr.mxu0 0.0
        %287 = vmatpush2.msra.mxu0 0.0
        %288 = vmatprep.subr.mxu0 0.0
        %289 = vmatpush2.msra.mxu0 0.0
        %290 = vmatprep.subr.mxu0 0.0
        %291 = vmatpush2.msra.mxu0 0.0
        %292 = vmatprep.subr.mxu0 0.0
        %293 = vmatpush2.msra.mxu0 0.0
        %294 = vmatprep.mubr.f32.mxu0 0.0
        %295 = vmatmul.mubr.f32.gmra.mxu0 %v225
        %v296 = vpop.f32.mrf.mxu0
        %v297 = vadd.f32 0.0, %v296
        %v298 = vpop.f32.mrf.mxu0
        %299 = vmatprep.mubr.f32.mxu0 0.0
        %300 = vmatmul.mubr.f32.gmra.mxu0 %v228
        %v301 = vpop.f32.mrf.mxu0
        %v302 = vadd.f32 0.0, %v301
        %v303 = vpop.f32.mrf.mxu0
        %304 = vdwg.mxu0
        %305 = vst [vmem:[%s218] sm:$0xff] %v297
        %306 = vst [vmem:[%s218 + $0x8] sm:$0xff] %v302
        %s307 = sand.u32 %s98, 1
        %s308 = scalar_lea.sflag [#allocation4], %s307
        %s309 = sand.u32 %s98, 1
        %s310 = smul.addr %s309, 16
        %s311 = scalar_lea.vmem [#allocation7], %s310
        // Predicated region
        $region37: #{tpu_custom_call.1} parent=27 // pred_check
          %p312 = pneg %p108
        $region38: #{tpu_custom_call.1} parent=27 // pred_check_branch
          %314 = sbr.rel (%p312) target = $region40
        $region39: #{tpu_custom_call.1} parent=27 // pred_region
          %s316 = ssub.s32 256, 256
          %317 = vsyncadd %s308, %s316
          %s318 = smul.addr %s26, 2
          %s319 = sadd.s32 %s27, %s318
          %s320 = smul.addr %s319, 128
          %s321 = scalar_lea.hbm %s2, %s320
          %s322 = sshll.u32 %s311, 4
          %s323 = int_to_ptr.vmem [resolvable:$true] %s322
          %328 = dma.vmem_to_hbm [thread:$0]  %s323, 256, %s321, %s308, 128, 128, 8
        $region40: #{tpu_custom_call.1} parent=27 // pred_fallthru
          _
      $region28: #{tpu_custom_call.1} parent=5 // pred_fallthru
        _
      %p329 = scmp.le.s32.totalorder 2, %s17
      // Predicated region
      $region41: #{tpu_custom_call.1} parent=5 // pred_check
        %p330 = pneg %p329
      $region42: #{tpu_custom_call.1} parent=5 // pred_check_branch
        %332 = sbr.rel (%p330) target = $region44
      $region43: #{tpu_custom_call.1} parent=5 // pred_region
        %s333 = ssub.s32 %s17, 2
        // Predicated region
        $region45: #{tpu_custom_call.1} parent=43 // pred_check
          %p334 = pneg %p114
        $region46: #{tpu_custom_call.1} parent=43 // pred_check_branch
          %336 = sbr.rel (%p334) target = $region48
        $region47: #{tpu_custom_call.1} parent=43 // pred_region
          %s337 = sand.u32 %s99, 1
          %s338 = scalar_lea.sflag [#allocation4], %s337
          %s339 = sand.u32 %s99, 1
          %s340 = smul.addr %s339, 16
          %s341 = scalar_lea.vmem [#allocation7], %s340
          %342 = dma.done %s338, 256
        $region48: #{tpu_custom_call.1} parent=43 // pred_fallthru
          _
      $region44: #{tpu_custom_call.1} parent=5 // pred_fallthru
        _
    $region6: #{tpu_custom_call.1} parent=1 // loop_footer
      %s21 = sadd.s32 1, %s17
    $region7: #{tpu_custom_call.1} parent=1 // loop_footer_branch
      %16 = sbr.rel target = $region3
    $region8: #{tpu_custom_call.1} parent=1 // loop_exit
      _
    %343 = vsyncpa [#allocation3], 1
    %s344 = scalar_lea.sflag [#allocation3], 1
    %345 = vsyncpa %s344, 1
    %346 = vsyncpa [#allocation6], 1
    %s347 = scalar_lea.sflag [#allocation6], 1
    %348 = vsyncpa %s347, 1
    %349 = vsyncpa [#allocation4], 1
    %s350 = scalar_lea.sflag [#allocation4], 1
    %351 = vsyncpa %s350, 1

</llo_original>
